<compile_context>
chip_gen: v7x
topology: tpu7x:2x2x1
jax: 0.10.0
libtpu: 0.0.40
codegen_flags: <defaults>
</compile_context>

<pallas_src>
import functools

import jax
import jax.numpy as jnp
from jax.experimental import pallas as pl
from jax.experimental.pallas import tpu as pltpu

BN_EPS = 1e-4
HIDDEN = 100          # 100 * infl_ratio, infl_ratio == 1
HID_PAD = 128         # hidden padded to one full lane width
LANE = 128
SUBLANE = 8
BLOCK_B_MAX = 1024    # batch tile (review: 512-1024); VMEM stays tiny
VMEM_LIMIT = 32 * 1024 * 1024


def _round_up(n, m):
    return ((n + m - 1) // m) * m


def _pad_lanes(a, w):
    return a if a.shape[1] == w else jnp.pad(a, ((0, 0), (0, w - a.shape[1])))


# --------------------------------------------------------------------------
# Pass 1 (stats only, "arbitrary" axis): per-feature sum and sum-of-squares of
# h = x @ sign(W1).  True batch size arrives as a scalar-prefetch SMEM value
# and is used to mask the ragged tail tile (no wrapper-side padding).
# --------------------------------------------------------------------------
def _stats_kernel(b_ref, x_ref, w1_ref, sum_ref, ssq_ref):
    @pl.when(pl.program_id(0) == 0)
    def _():
        sum_ref[...] = jnp.zeros_like(sum_ref)
        ssq_ref[...] = jnp.zeros_like(ssq_ref)

    blk = x_ref.shape[0]
    row = (pl.program_id(0) * blk
           + jax.lax.broadcasted_iota(jnp.int32, (blk, 1), 0))
    valid = row < b_ref[0]

    x = jnp.where(valid, x_ref[...], 0.0).astype(jnp.bfloat16)
    h = jnp.dot(x, w1_ref[...], preferred_element_type=jnp.float32)

    sum_ref[...] += jnp.sum(h, axis=0, keepdims=True)
    ssq_ref[...] += jnp.sum(h * h, axis=0, keepdims=True)


# --------------------------------------------------------------------------
# Pass 2 ("parallel" axis, megacore-friendly): recompute fc1, apply the fused
# BN+sign threshold, fc5, masked log-softmax.
#   slab rows: 0 = gamma, 1 = thresh (= beta*sqrt(var+eps) - gamma*mean),
#              2 = b5 (all precomputed outside the kernel, lane-padded).
# --------------------------------------------------------------------------
def _fwd_kernel(x_ref, w1_ref, slab_ref, w5_ref, out_ref, *, out_features):
    hid = w5_ref.shape[0]
    outp = w5_ref.shape[1]

    x = x_ref[...].astype(jnp.bfloat16)
    h = jnp.dot(x, w1_ref[...], preferred_element_type=jnp.float32)

    gamma = slab_ref[0:1, 0:hid]
    thresh = slab_ref[1:2, 0:hid]
    b5 = slab_ref[2:3, 0:outp]

    # sign(gamma*(h-mean)*rsqrt(var+eps) + beta) == sign(gamma*h + thresh)
    pre = gamma * h + thresh
    a = jnp.sign(pre).astype(jnp.bfloat16)          # {-1, 0, +1}, exact in bf16

    z = jnp.dot(a, w5_ref[...], preferred_element_type=jnp.float32) + b5

    # Mask padded output lanes before the log-softmax reductions.
    lane = jax.lax.broadcasted_iota(jnp.int32, z.shape, 1)
    z = jnp.where(lane < out_features, z, jnp.float32(-1e30))

    m = jnp.max(z, axis=-1, keepdims=True)
    lse = m + jnp.log(jnp.sum(jnp.exp(z - m), axis=-1, keepdims=True))
    out_ref[...] = (z - lse).astype(out_ref.dtype)


# --------------------------------------------------------------------------
# One-time parameter preparation (plain JAX, outside the kernels).
# --------------------------------------------------------------------------
def prepare_params(params, out_features):
    """Binarize weights (sign, like the reference), pad feature dims to 128
    multiples, cast to bf16, and keep gamma/beta/b5 as lane-padded rows."""
    out_pad = _round_up(out_features, LANE)
    slab_w = max(HID_PAD, out_pad)

    w1 = jnp.asarray(params["w1"], jnp.float32)            # (100, F_in)
    w5 = jnp.asarray(params["w5"], jnp.float32)            # (out, 100)

    w1_t = jnp.pad(jnp.sign(w1).T, ((0, 0), (0, HID_PAD - HIDDEN)))
    w5_t = jnp.pad(jnp.sign(w5).T,
                   ((0, HID_PAD - HIDDEN), (0, out_pad - out_features)))

    gamma = jnp.pad(jnp.asarray(params["gamma"], jnp.float32),
                    (0, HID_PAD - HIDDEN))
    beta = jnp.pad(jnp.asarray(params["beta"], jnp.float32),
                   (0, HID_PAD - HIDDEN))
    b5 = jnp.pad(jnp.asarray(params["b5"], jnp.float32),
                 (0, slab_w - out_features))

    # fc1 bias intentionally dropped: cancelled by batch-stats BatchNorm.
    return {
        "w1_t": w1_t.astype(jnp.bfloat16),                  # (F_in, 128)
        "w5_t": w5_t.astype(jnp.bfloat16),                  # (128, out_pad)
        "gamma": gamma[None, :],                            # (1, 128) f32
        "beta": beta[None, :],                              # (1, 128) f32
        "b5": b5[None, :],                                  # (1, slab_w) f32
        "out_features": int(out_features),
    }


# --------------------------------------------------------------------------
# Forward wrapper.
# --------------------------------------------------------------------------
def bnn_1blk_100_forward(x, prepped):
    w1_t = prepped["w1_t"]
    w5_t = prepped["w5_t"]
    gamma = prepped["gamma"]
    beta = prepped["beta"]
    b5 = prepped["b5"]
    out_features = prepped["out_features"]

    in_features = w1_t.shape[0]
    out_pad = w5_t.shape[1]
    slab_w = b5.shape[1]

    B = x.shape[0]
    block_b = min(BLOCK_B_MAX, _round_up(B, SUBLANE))
    n_tiles = pl.cdiv(B, block_b)
    b_arr = jnp.array([B], jnp.int32)                       # SMEM scalar (true B)

    # ---- pass 1: batch statistics only ----------------------------------
    h_sum, h_sq = pl.pallas_call(
        _stats_kernel,
        out_shape=(jax.ShapeDtypeStruct((1, HID_PAD), jnp.float32),
                   jax.ShapeDtypeStruct((1, HID_PAD), jnp.float32)),
        grid_spec=pltpu.PrefetchScalarGridSpec(
            num_scalar_prefetch=1,
            grid=(n_tiles,),
            in_specs=[pl.BlockSpec((block_b, in_features), lambda i, b: (i, 0)),
                      pl.BlockSpec((in_features, HID_PAD), lambda i, b: (0, 0))],
            out_specs=(pl.BlockSpec((1, HID_PAD), lambda i, b: (0, 0)),
                       pl.BlockSpec((1, HID_PAD), lambda i, b: (0, 0)))),
        compiler_params=pltpu.CompilerParams(
            dimension_semantics=("arbitrary",),      # stats accumulate over B tiles
            vmem_limit_bytes=VMEM_LIMIT),
    )(b_arr, x, w1_t)

    # ---- BN constants: tiny JAX op between the passes --------------------
    inv_b = jnp.float32(1.0 / B)
    mean = h_sum * inv_b                                    # (1, 128)
    var = jnp.maximum(h_sq * inv_b - mean * mean, 0.0)      # guard cancellation
    thresh = beta * jnp.sqrt(var + BN_EPS) - gamma * mean   # (1, 128)
    slab = jnp.concatenate(
        [_pad_lanes(gamma, slab_w), _pad_lanes(thresh, slab_w), b5], axis=0)

    # ---- pass 2: fc1 recompute + BN-sign + fc5 + log-softmax -------------
    kernel2 = functools.partial(_fwd_kernel, out_features=out_features)
    out = pl.pallas_call(
        kernel2,
        out_shape=jax.ShapeDtypeStruct((B, out_pad), jnp.float32),
        grid=(n_tiles,),
        in_specs=[pl.BlockSpec((block_b, in_features), lambda i: (i, 0)),
                  pl.BlockSpec((in_features, HID_PAD), lambda i: (0, 0)),
                  pl.BlockSpec((3, slab_w), lambda i: (0, 0)),
                  pl.BlockSpec((HID_PAD, out_pad), lambda i: (0, 0))],
        out_specs=pl.BlockSpec((block_b, out_pad), lambda i: (i, 0)),
        compiler_params=pltpu.CompilerParams(
            dimension_semantics=("parallel",),       # B tiles independent here
            vmem_limit_bytes=VMEM_LIMIT),
    )(x, w1_t, slab, w5_t)

    return out[:, :out_features]


# --------------------------------------------------------------------------
# Init + pure-JAX reference (for correctness check).
# --------------------------------------------------------------------------
def init_params(key, in_features, out_features, hidden=HIDDEN):
    """Deterministic PyTorch-Linear-style init; BN affine = default (1, 0)."""
    k1, k2, k3, k4 = jax.random.split(key, 4)
    bound1 = 1.0 / jnp.sqrt(in_features)
    bound5 = 1.0 / jnp.sqrt(hidden)
    return {
        "w1": jax.random.uniform(k1, (hidden, in_features), jnp.float32,
                                 -bound1, bound1),
        "b1": jax.random.uniform(k2, (hidden,), jnp.float32, -bound1, bound1),
        "gamma": jnp.ones((hidden,), jnp.float32),
        "beta": jnp.zeros((hidden,), jnp.float32),
        "w5": jax.random.uniform(k3, (out_features, hidden), jnp.float32,
                                 -bound5, bound5),
        "b5": jax.random.uniform(k4, (out_features,), jnp.float32,
                                 -bound5, bound5),
    }


def _reference_forward(x, params):
    """Pure-JAX reference of the train-mode forward (bf16 input rounding
    matched to the kernel so sign thresholds agree)."""
    xb = x.astype(jnp.bfloat16).astype(jnp.float32)
    h = xb @ jnp.sign(params["w1"]).T            # b1 cancelled by batch-stats BN
    mean = jnp.mean(h, axis=0, keepdims=True)
    var = jnp.mean(h * h, axis=0, keepdims=True) - mean * mean
    pre = params["gamma"] * (h - mean) + params["beta"] * jnp.sqrt(var + BN_EPS)
    a = jnp.sign(pre)
    z = a @ jnp.sign(params["w5"]).T + params["b5"]
    return jax.nn.log_softmax(z, axis=-1)


if __name__ == "__main__":
    B, IN_FEATURES, OUT_FEATURES = 8, 32, 10

    key = jax.random.PRNGKey(0)
    kx, kp = jax.random.split(key)
    x = jax.random.normal(kx, (B, IN_FEATURES), jnp.float32)
    params = init_params(kp, IN_FEATURES, OUT_FEATURES)

    prepped = prepare_params(params, OUT_FEATURES)   # one-time: binarized bf16 weights
    out = bnn_1blk_100_forward(x, prepped)
    out = jax.block_until_ready(out)

    assert out.shape == (B, OUT_FEATURES)
    assert bool(jnp.all(jnp.isfinite(out)))
    # log-softmax rows should (approximately) exp-sum to 1
    row_sums = jnp.sum(jnp.exp(out), axis=-1)
    assert jnp.allclose(row_sums, jnp.ones_like(row_sums), atol=1e-4)
    # compare against the pure-JAX reference
    ref = _reference_forward(x, params)
    assert jnp.allclose(out, ref, atol=2e-3), float(jnp.max(jnp.abs(out - ref)))
    print("KERNEL_OK")
</pallas_src>

<mosaic_0001>
module attributes {stable_mosaic.version = 11 : i64} {
  func.func @_stats_kernel(%arg0: i32, %arg1: memref<1xi32, #tpu.memory_space<smem>>, %arg2: memref<8x32xf32, #tpu.memory_space<vmem>>, %arg3: memref<32x128xbf16, #tpu.memory_space<vmem>>, %arg4: memref<1x128xf32, #tpu.memory_space<vmem>>, %arg5: memref<1x128xf32, #tpu.memory_space<vmem>>) attributes {dimension_semantics = [#tpu.dimension_semantics<arbitrary>], iteration_bounds = array<i64: 1>, scalar_prefetch = 1 : i64, scratch_operands = 0 : i64, tpu.core_type = #tpu.core_type<tc>, window_params = [{transform_indices = @transform_0, window_bounds = array<i64: 8, 32>}, {pipeline_mode = #tpu.pipeline_mode<synchronous>, transform_indices = @transform_1, window_bounds = array<i64: 32, 128>}, {pipeline_mode = #tpu.pipeline_mode<synchronous>, transform_indices = @transform_2, window_bounds = array<i64: 1, 128>}, {pipeline_mode = #tpu.pipeline_mode<synchronous>, transform_indices = @transform_3, window_bounds = array<i64: 1, 128>}]} {
    %c0_i32 = arith.constant 0 : i32
    %0 = arith.cmpi eq, %arg0, %c0_i32 : i32
    %1 = arith.extui %0 : i1 to i32
    %c0_i32_0 = arith.constant 0 : i32
    %2 = arith.cmpi ne, %1, %c0_i32_0 : i32
    scf.if %2 {
      %cst_16 = arith.constant 0.000000e+00 : f32
      %29 = vector.broadcast %cst_16 : f32 to vector<1x128xf32>
      %c0_17 = arith.constant 0 : index
      %c0_18 = arith.constant 0 : index
      %30 = vector.load %arg4[%c0_17, %c0_18] : memref<1x128xf32, #tpu.memory_space<vmem>>, vector<1x128xf32>
      tpu.vector_store %arg4[%c0_17, %c0_18], %29 {strides = array<i32>} : memref<1x128xf32, #tpu.memory_space<vmem>>, vector<1x128xf32>,
      %cst_19 = arith.constant 0.000000e+00 : f32
      %31 = vector.broadcast %cst_19 : f32 to vector<1x128xf32>
      %c0_20 = arith.constant 0 : index
      %c0_21 = arith.constant 0 : index
      %32 = vector.load %arg5[%c0_20, %c0_21] : memref<1x128xf32, #tpu.memory_space<vmem>>, vector<1x128xf32>
      tpu.vector_store %arg5[%c0_20, %c0_21], %31 {strides = array<i32>} : memref<1x128xf32, #tpu.memory_space<vmem>>, vector<1x128xf32>,
    } else {
    }
    %c8_i32 = arith.constant 8 : i32
    %3 = arith.muli %arg0, %c8_i32 : i32
    %4 = tpu.iota {dimensions = array<i32: 0>} : vector<8x1xi32>
    %5 = vector.broadcast %3 : i32 to vector<8x1xi32>
    %6 = arith.addi %5, %4 : vector<8x1xi32>
    %c0 = arith.constant 0 : index
    %7 = memref.load %arg1[%c0] : memref<1xi32, #tpu.memory_space<smem>>
    %8 = vector.broadcast %7 : i32 to vector<8x1xi32>
    %9 = arith.cmpi slt, %6, %8 : vector<8x1xi32>
    %c0_1 = arith.constant 0 : index
    %c0_2 = arith.constant 0 : index
    %10 = vector.load %arg2[%c0_1, %c0_2] : memref<8x32xf32, #tpu.memory_space<vmem>>, vector<8x32xf32>
    %cst = arith.constant 0.000000e+00 : f32
    %11 = vector.shape_cast %9 : vector<8x1xi1> to vector<8x1xi1>
    %12 = vector.broadcast %11 : vector<8x1xi1> to vector<8x32xi1>
    %13 = vector.broadcast %cst : f32 to vector<8x32xf32>
    %14 = arith.select %12, %10, %13 : vector<8x32xi1>, vector<8x32xf32>
    %15 = arith.truncf %14 : vector<8x32xf32> to vector<8x32xbf16>
    %c0_3 = arith.constant 0 : index
    %c0_4 = arith.constant 0 : index
    %16 = vector.load %arg3[%c0_3, %c0_4] : memref<32x128xbf16, #tpu.memory_space<vmem>>, vector<32x128xbf16>
    %cst_5 = arith.constant dense<0.000000e+00> : vector<8x128xf32>
    %17 = tpu.matmul %15, %16, %cst_5 {dimension_numbers = #tpu.dot_dimension_numbers<[1], [0], [0], [1], [0, 0, 1, 1], [], []>} : vector<8x32xbf16>, vector<32x128xbf16>, vector<8x128xf32> -> vector<8x128xf32>
    %c0_6 = arith.constant 0 : index
    %c0_7 = arith.constant 0 : index
    %18 = vector.load %arg4[%c0_6, %c0_7] : memref<1x128xf32, #tpu.memory_space<vmem>>, vector<1x128xf32>
    %cst_8 = arith.constant dense<0.000000e+00> : vector<128xf32>
    %19 = vector.multi_reduction <add>, %17, %cst_8 [0] : vector<8x128xf32> to vector<128xf32>
    %20 = vector.shape_cast %19 : vector<128xf32> to vector<1x128xf32>
    %21 = arith.addf %18, %20 : vector<1x128xf32>
    %c0_9 = arith.constant 0 : index
    %c0_10 = arith.constant 0 : index
    %22 = vector.load %arg4[%c0_9, %c0_10] : memref<1x128xf32, #tpu.memory_space<vmem>>, vector<1x128xf32>
    tpu.vector_store %arg4[%c0_9, %c0_10], %21 {strides = array<i32>} : memref<1x128xf32, #tpu.memory_space<vmem>>, vector<1x128xf32>,
    %c0_11 = arith.constant 0 : index
    %c0_12 = arith.constant 0 : index
    %23 = vector.load %arg5[%c0_11, %c0_12] : memref<1x128xf32, #tpu.memory_space<vmem>>, vector<1x128xf32>
    %24 = arith.mulf %17, %17 : vector<8x128xf32>
    %cst_13 = arith.constant dense<0.000000e+00> : vector<128xf32>
    %25 = vector.multi_reduction <add>, %24, %cst_13 [0] : vector<8x128xf32> to vector<128xf32>
    %26 = vector.shape_cast %25 : vector<128xf32> to vector<1x128xf32>
    %27 = arith.addf %23, %26 : vector<1x128xf32>
    %c0_14 = arith.constant 0 : index
    %c0_15 = arith.constant 0 : index
    %28 = vector.load %arg5[%c0_14, %c0_15] : memref<1x128xf32, #tpu.memory_space<vmem>>, vector<1x128xf32>
    tpu.vector_store %arg5[%c0_14, %c0_15], %27 {strides = array<i32>} : memref<1x128xf32, #tpu.memory_space<vmem>>, vector<1x128xf32>,
    return
  }
  func.func @transform_0(%arg0: i32, %arg1: memref<1xi32, #tpu.memory_space<smem>>) -> (i32, i32) {
    %c0_i32 = arith.constant 0 : i32
    %c0_i32_0 = arith.constant 0 : i32
    return %arg0, %c0_i32 : i32, i32
  }
  func.func @transform_1(%arg0: i32, %arg1: memref<1xi32, #tpu.memory_space<smem>>) -> (i32, i32) {
    %c0_i32 = arith.constant 0 : i32
    %c0_i32_0 = arith.constant 0 : i32
    %c0_i32_1 = arith.constant 0 : i32
    return %c0_i32, %c0_i32_0 : i32, i32
  }
  func.func @transform_2(%arg0: i32, %arg1: memref<1xi32, #tpu.memory_space<smem>>) -> (i32, i32) {
    %c0_i32 = arith.constant 0 : i32
    %c0_i32_0 = arith.constant 0 : i32
    %c0_i32_1 = arith.constant 0 : i32
    return %c0_i32, %c0_i32_0 : i32, i32
  }
  func.func @transform_3(%arg0: i32, %arg1: memref<1xi32, #tpu.memory_space<smem>>) -> (i32, i32) {
    %c0_i32 = arith.constant 0 : i32
    %c0_i32_0 = arith.constant 0 : i32
    %c0_i32_1 = arith.constant 0 : i32
    return %c0_i32, %c0_i32_0 : i32, i32
  }
}

</mosaic_0001>

<llo_original>
// kernel: tpu_custom_call.1
$region0: #{tpu_custom_call.1}
  #allocation0 [shape = 'u32[]', space=smem, size = 0x4, offset = 0x4, fixed_abs, tag = 'smem constant byte address 0x4 - core index']
  #allocation1 [shape = 'u32[144,128]{1,0:T(1,128)}', space=vmem, size = 0x12000, scoped, tag = 'internal scratch']
  #allocation2 [shape = 's32[1]{0}', space=sflag, size = 0x4, scoped, tag = 'scoped memory for tpu_custom_call.1']
  #allocation3 [shape = 's32[1]{0:T(128)S(6)}', space=smem, size = 0x200, scoped, tag = 'prefetched SMEM operand 0']
  %s0 = inlined_call_operand.<no memory space> [shape: s32[1], index: 0, kind: input, shape index: {}]
  %s1 = inlined_call_operand.hbm [shape: f32[8,32], index: 1, kind: input, shape index: {}]
  %s2 = inlined_call_operand.hbm [shape: bf16[32,128], index: 2, kind: input, shape index: {}]
  %s3 = inlined_call_operand.hbm [shape: f32[1,128], index: 3, kind: output, shape index: {0}]
  %s4 = inlined_call_operand.hbm [shape: f32[1,128], index: 4, kind: output, shape index: {1}]
  %5 = xla_tuple %s3, %s4
  %s6 = sld [smem:[#allocation0]]
  $region38: #{tpu_custom_call.1} parent=0
    _
  %s8 = ssub.s32 1, %s6
  %s9 = scalar_select 0, %s8, %s6
  %10 = sst [smem:[#allocation3]] %s0
  $region1: #{tpu_custom_call.1} parent=0
    #allocation4 [shape = 'u8[4096]{0}', space=vmem, size = 0x1000, scoped, tag = 'input window, operand 1, single buffered']
    #allocation5 [shape = 's32[1]{0}', space=sflag, size = 0x4, scoped, tag = 'scoped memory for tpu_custom_call.1']
    #allocation6 [shape = 's32[1]{0}', space=sflag, size = 0x4, scoped, tag = 'scoped memory for tpu_custom_call.1']
    #allocation7 [shape = 'u8[8192]{0}', space=vmem, size = 0x2000, scoped, tag = 'input window, operand 2, single buffered']
    #allocation8 [shape = 's32[1]{0}', space=sflag, size = 0x4, scoped, tag = 'scoped memory for tpu_custom_call.1']
    #allocation9 [shape = 'u8[512]{0}', space=vmem, size = 0x400, scoped, tag = 'output window, operand 0, single buffered']
    #allocation10 [shape = 'u8[512]{0}', space=vmem, size = 0x400, scoped, tag = 'output window, operand 1, single buffered']
    #allocation11 [shape = 's32[1]{0}', space=sflag, size = 0x4, scoped, tag = 'scoped memory for tpu_custom_call.1']
    %11 = vsyncpa [#allocation5], 0
    %12 = vsyncpa [#allocation8], 0
    %13 = vsyncpa [#allocation6], 0
    %14 = vsyncpa [#allocation11], 0
    // Predicated region
    $region2: #{tpu_custom_call.1} parent=1 // pred_check
      _
    $region3: #{tpu_custom_call.1} parent=1 // pred_check_branch
      %16 = sbr.rel (0) target = $region5
    $region4: #{tpu_custom_call.1} parent=1 // pred_region
      %s18 = ssub.s32 128, 128
      %19 = vsyncadd [#allocation5], %s18
      %s21 = sshll.u32 [#allocation4], 4
      %s22 = int_to_ptr.vmem [resolvable:$true] %s21
      %24 = dma.hbm_to_vmem [thread:$0]  %s1, 128, %s22, [#allocation5]
    $region5: #{tpu_custom_call.1} parent=1 // pred_fallthru
      _
    // Predicated region
    $region6: #{tpu_custom_call.1} parent=1 // pred_check
      _
    $region7: #{tpu_custom_call.1} parent=1 // pred_check_branch
      %26 = sbr.rel (0) target = $region9
    $region8: #{tpu_custom_call.1} parent=1 // pred_region
      %s28 = ssub.s32 256, 256
      %29 = vsyncadd [#allocation8], %s28
      %s30 = sshll.u32 [#allocation7], 4
      %s31 = int_to_ptr.vmem [resolvable:$true] %s30
      %36 = dma.hbm_to_vmem [thread:$0]  %s2, 256, %s31, [#allocation8], 64, 64, 4
    $region9: #{tpu_custom_call.1} parent=1 // pred_fallthru
      _
    // Predicated region
    $region10: #{tpu_custom_call.1} parent=1 // pred_check
      _
    $region11: #{tpu_custom_call.1} parent=1 // pred_check_branch
      %38 = sbr.rel (0) target = $region13
    $region12: #{tpu_custom_call.1} parent=1 // pred_region
      %39 = dma.done [#allocation5], 128
    $region13: #{tpu_custom_call.1} parent=1 // pred_fallthru
      _
    // Predicated region
    $region14: #{tpu_custom_call.1} parent=1 // pred_check
      _
    $region15: #{tpu_custom_call.1} parent=1 // pred_check_branch
      %41 = sbr.rel (0) target = $region17
    $region16: #{tpu_custom_call.1} parent=1 // pred_region
      %42 = dma.done [#allocation8], 256
    $region17: #{tpu_custom_call.1} parent=1 // pred_fallthru
      _
    %p44 = scmp.eq.s32.totalorder 0, 0
    // Predicated region
    $region18: #{tpu_custom_call.1} parent=1 // pred_check
      %p45 = pneg %p44
    $region19: #{tpu_custom_call.1} parent=1 // pred_check_branch
      %47 = sbr.rel (%p45) target = $region21
    $region20: #{tpu_custom_call.1} parent=1 // pred_region
      %48 = vst [vmem:[#allocation9] sm:$0x1] 0.0
      %49 = vst [vmem:[#allocation10] sm:$0x1] 0.0
    $region21: #{tpu_custom_call.1} parent=1 // pred_fallthru
      _
    %s50 = smul.u32 0, 8
    %v51 = vlaneseq
    %v52 = vshrl.u32 %v51, 7
    %v53 = vstv %s50
    %v54 = vadd.s32 %v53, %v52
    %s55 = sld [smem:[#allocation3]]
    %v56 = vstv %s55
    %vm57 = vcmp.lt.s32.totalorder %v54, %v56
    %v58 = vld [vmem:[#allocation4] sm:$0xff]
    %v59 = vsel %vm57, 1, 0
    %vm60 = vcmp.eq.s32.totalorder %v59, 1
    %v61 = vsel %vm60, %v58, 0.0
    %v62 = vpack.c.bf16 %v61, %v61
    %v63 = vld [vmem:[#allocation7] sm:$0xf]
    %v64 = vld [vmem:[#allocation7 + $0x4] sm:$0xf]
    %v65 = vld [vmem:[#allocation7 + $0x8] sm:$0xf]
    %v66 = vld [vmem:[#allocation7 + $0xc] sm:$0xf]
    %v71 = vunpack.c.l.b16 %v63
    %v72 = vunpack.c.l.b16 %v64
    %v73 = vunpack.c.l.b16 %v65
    %v74 = vunpack.c.l.b16 %v66
    %v75 = vpack.c.b16 %v72, %v71
    %v76 = vpack.c.b16 %v74, %v73
    %vm79 = vcmask 261120
    %v81 = vsel %vm79, %v62, 0
    %83 = vmatprep.subr.bf16.mxu0 0
    %84 = vmatpush1.bf16.msra.mxu0 %v75
    %85 = vmatprep.subr.bf16.mxu0 0
    %86 = vmatpush1.bf16.msra.mxu0 %v76
    %87 = vmatprep.subr.bf16.mxu0 0
    %88 = vmatpush1.bf16.msra.mxu0 0
    %89 = vmatprep.subr.bf16.mxu0 0
    %90 = vmatpush1.bf16.msra.mxu0 0
    %91 = vmatprep.subr.bf16.mxu0 0
    %92 = vmatpush1.bf16.msra.mxu0 0
    %93 = vmatprep.subr.bf16.mxu0 0
    %94 = vmatpush1.bf16.msra.mxu0 0
    %95 = vmatprep.subr.bf16.mxu0 0
    %96 = vmatpush1.bf16.msra.mxu0 0
    %97 = vmatprep.subr.bf16.mxu0 0
    %98 = vmatpush1.bf16.msra.mxu0 0
    %99 = vmatprep.subr.bf16.mxu0 0
    %100 = vmatpush1.bf16.msra.mxu0 0
    %101 = vmatprep.subr.bf16.mxu0 0
    %102 = vmatpush1.bf16.msra.mxu0 0
    %103 = vmatprep.subr.bf16.mxu0 0
    %104 = vmatpush1.bf16.msra.mxu0 0
    %105 = vmatprep.subr.bf16.mxu0 0
    %106 = vmatpush1.bf16.msra.mxu0 0
    %107 = vmatprep.subr.bf16.mxu0 0
    %108 = vmatpush1.bf16.msra.mxu0 0
    %109 = vmatprep.subr.bf16.mxu0 0
    %110 = vmatpush1.bf16.msra.mxu0 0
    %111 = vmatprep.subr.bf16.mxu0 0
    %112 = vmatpush1.bf16.msra.mxu0 0
    %113 = vmatprep.subr.bf16.mxu0 0
    %114 = vmatpush1.bf16.msra.mxu0 0
    %115 = vmatprep.mubr.bf16.mxu0 0
    %116 = vmatmul.mubr.bf16.gmra.mrb[0].mxu0 %v81
    %v117 = vpop.f32.mrb[0].mxu0
    %v118 = vadd.f32 0.0, %v117
    %v119 = vpop.f32.mrb[0].mxu0
    %v120 = vpop.f32.mrb[0].mxu0
    %v121 = vpop.f32.mrb[0].mxu0
    %122 = vdwg.mxu0
    %v123 = vld [vmem:[#allocation9] sm:$0x1]
    %v124 = vrot.slane %v118, 4
    %v125 = vadd.f32 %v118, %v124
    %v126 = vrot.slane %v125, 2
    %v127 = vadd.f32 %v125, %v126
    %v128 = vrot.slane %v127, 1
    %v129 = vadd.f32 %v127, %v128
    %v130 = vadd.f32 %v123, %v129
    %131 = vst [vmem:[#allocation9] sm:$0x1] %v130
    %v132 = vld [vmem:[#allocation10] sm:$0x1]
    %v133 = vmul.f32 %v118, %v118
    %v134 = vrot.slane %v133, 4
    %v135 = vadd.f32 %v133, %v134
    %v136 = vrot.slane %v135, 2
    %v137 = vadd.f32 %v135, %v136
    %v138 = vrot.slane %v137, 1
    %v139 = vadd.f32 %v137, %v138
    %v140 = vadd.f32 %v132, %v139
    %141 = vst [vmem:[#allocation10] sm:$0x1] %v140
    // Predicated region
    $region22: #{tpu_custom_call.1} parent=1 // pred_check
      _
    $region23: #{tpu_custom_call.1} parent=1 // pred_check_branch
      %143 = sbr.rel (0) target = $region25
    $region24: #{tpu_custom_call.1} parent=1 // pred_region
      %s145 = ssub.s32 16, 16
      %146 = vsyncadd [#allocation6], %s145
      %s148 = sshll.u32 [#allocation9], 4
      %s149 = int_to_ptr.vmem [resolvable:$true] %s148
      %151 = dma.vmem_to_hbm [thread:$0]  %s149, 16, %s3, [#allocation6]
    $region25: #{tpu_custom_call.1} parent=1 // pred_fallthru
      _
    // Predicated region
    $region26: #{tpu_custom_call.1} parent=1 // pred_check
      _
    $region27: #{tpu_custom_call.1} parent=1 // pred_check_branch
      %153 = sbr.rel (0) target = $region29
    $region28: #{tpu_custom_call.1} parent=1 // pred_region
      %s155 = ssub.s32 16, 16
      %156 = vsyncadd [#allocation11], %s155
      %s158 = sshll.u32 [#allocation10], 4
      %s159 = int_to_ptr.vmem [resolvable:$true] %s158
      %161 = dma.vmem_to_hbm [thread:$0]  %s159, 16, %s4, [#allocation11]
    $region29: #{tpu_custom_call.1} parent=1 // pred_fallthru
      _
    // Predicated region
    $region30: #{tpu_custom_call.1} parent=1 // pred_check
      _
    $region31: #{tpu_custom_call.1} parent=1 // pred_check_branch
      %163 = sbr.rel (0) target = $region33
    $region32: #{tpu_custom_call.1} parent=1 // pred_region
      %164 = dma.done [#allocation6], 16
    $region33: #{tpu_custom_call.1} parent=1 // pred_fallthru
      _
    // Predicated region
    $region34: #{tpu_custom_call.1} parent=1 // pred_check
      _
    $region35: #{tpu_custom_call.1} parent=1 // pred_check_branch
      %166 = sbr.rel (0) target = $region37
    $region36: #{tpu_custom_call.1} parent=1 // pred_region
      %167 = dma.done [#allocation11], 16
    $region37: #{tpu_custom_call.1} parent=1 // pred_fallthru
      _
    %168 = vsyncpa [#allocation5], 1
    %169 = vsyncpa [#allocation8], 1
    %170 = vsyncpa [#allocation6], 1
    %171 = vsyncpa [#allocation11], 1

</llo_original>
